<compile_context>
chip_gen: v6e
topology: v6e:2x2x1
jax: 0.10.0
libtpu: 0.0.40
codegen_flags: <defaults>
</compile_context>

<pallas_src>
import functools

import jax
import jax.numpy as jnp
from jax import lax
from jax.experimental import pallas as pl
from jax.experimental.pallas import tpu as pltpu


def _simclr_kernel(a_ref, c0_ref, c1_ref, out_ref, m_sc, l_sc, pos_sc, *,
                   inv_temperature, b_valid, b_pad, tile):
    i = pl.program_id(0)          # anchor-row tile
    j = pl.program_id(1)          # contrast-column tile (online-softmax axis)
    f32 = jnp.float32

    @pl.when(j == 0)
    def _():
        m_sc[...] = jnp.full(m_sc.shape, -1e30, dtype=m_sc.dtype)
        l_sc[...] = jnp.zeros_like(l_sc)
        pos_sc[...] = jnp.zeros_like(pos_sc)

    a = a_ref[...]                # [tile, dim]  anchor rows (view 0), input dtype
    c0 = c0_ref[...]              # [tile, dim]  contrast columns from view 0
    c1 = c1_ref[...]              # [tile, dim]  contrast columns from view 1

    # Contract on the last dim of both operands (A @ B^T): MXU-native layout,
    # no in-kernel transpose.  Accumulate in f32; apply 1/T to the f32 outputs
    # so low-precision inputs are not rounded by the temperature fold.
    dn = (((1,), (1,)), ((), ()))
    inv_t = f32(inv_temperature)
    d0 = lax.dot_general(a, c0, dn, preferred_element_type=f32) * inv_t  # [tile, tile]
    d1 = lax.dot_general(a, c1, dn, preferred_element_type=f32) * inv_t  # [tile, tile]

    row_ids = i * tile + lax.broadcasted_iota(jnp.int32, (tile, tile), 0)
    col_ids = j * tile + lax.broadcasted_iota(jnp.int32, (tile, tile), 1)
    is_diag = row_ids == col_ids  # self column (view-0 half) / positive (view-1 half)

    # Positive-pair logit, taken from the same MXU output that feeds the
    # denominator (exactly one hit per real row across all column tiles).
    pos_sc[...] += jnp.sum(jnp.where(is_diag, d1, 0.0), axis=1, keepdims=True)

    neg_big = -1e30
    keep0 = jnp.logical_not(is_diag)        # drop the self logit from the denominator
    if b_pad != b_valid:                    # mask zero-padded contrast columns
        col_valid = col_ids < b_valid
        keep0 = jnp.logical_and(keep0, col_valid)
        d1 = jnp.where(col_valid, d1, neg_big)
    d0 = jnp.where(keep0, d0, neg_big)

    # Online log-sum-exp update over this column chunk (both halves).
    m_prev = m_sc[...]
    m_new = jnp.maximum(m_prev,
                        jnp.maximum(jnp.max(d0, axis=1, keepdims=True),
                                    jnp.max(d1, axis=1, keepdims=True)))
    alpha = jnp.exp(m_prev - m_new)
    chunk_sum = (jnp.sum(jnp.exp(d0 - m_new), axis=1, keepdims=True)
                 + jnp.sum(jnp.exp(d1 - m_new), axis=1, keepdims=True))
    l_sc[...] = alpha * l_sc[...] + chunk_sum
    m_sc[...] = m_new

    @pl.when(j == pl.num_programs(1) - 1)
    def _():
        # per-row loss = logsumexp(denominator logits) - positive logit
        out_ref[...] = m_sc[...] + jnp.log(l_sc[...]) - pos_sc[...]


def _round_up(x, m):
    return ((x + m - 1) // m) * m


def _pick_tile(b, dim, itemsize):
    """Largest square tile whose blocks + f32 chunk temporaries stay well
    inside the default 32 MiB scoped VMEM (valid for v5e/v6e/v7x)."""
    budget = 24 * 1024 * 1024
    tile = 512
    while tile > 8:
        blocks = 3 * 2 * tile * dim * itemsize   # anchor + 2 contrast views, double-buffered
        chunk_tmps = 6 * tile * tile * 4         # d0/d1/exp/mask f32 temporaries
        if blocks + chunk_tmps <= budget:
            break
        tile //= 2
    return max(8, min(tile, _round_up(b, 8)))


def simclr_loss(features, temperature, *, block_rows=None):
    """features: [b, 2, dim] -> scalar SimCLR loss (forward only, anchor = view 0)."""
    b, n, dim = features.shape
    assert n == 2

    view0 = features[:, 0, :]                    # [b, dim] anchors / contrast half 0
    view1 = features[:, 1, :]                    # [b, dim] positives / contrast half 1

    itemsize = jnp.dtype(features.dtype).itemsize
    tile = block_rows if block_rows is not None else _pick_tile(b, dim, itemsize)
    tile = max(8, _round_up(int(tile), 8))
    b_pad = _round_up(b, tile)
    if b_pad != b:
        pad = ((0, b_pad - b), (0, 0))
        view0 = jnp.pad(view0, pad)
        view1 = jnp.pad(view1, pad)

    num_tiles = b_pad // tile
    kernel = functools.partial(
        _simclr_kernel,
        inv_temperature=1.0 / float(temperature),
        b_valid=b, b_pad=b_pad, tile=tile)

    cost = pl.CostEstimate(
        flops=4 * b_pad * b_pad * dim,                             # two A @ V^T matmuls
        transcendentals=2 * b_pad * b_pad + 2 * b_pad * num_tiles,  # exps + rescale/log
        bytes_accessed=(2 * num_tiles + 1) * b_pad * dim * itemsize + 4 * b_pad)

    grid_spec = pltpu.PrefetchScalarGridSpec(
        num_scalar_prefetch=0,
        grid=(num_tiles, num_tiles),
        in_specs=[
            pl.BlockSpec((tile, dim), lambda i, j: (i, 0)),   # anchor rows (view 0)
            pl.BlockSpec((tile, dim), lambda i, j: (j, 0)),   # view-0 contrast columns
            pl.BlockSpec((tile, dim), lambda i, j: (j, 0)),   # view-1 contrast columns
        ],
        out_specs=pl.BlockSpec((tile, 1), lambda i, j: (i, 0)),
        scratch_shapes=[pltpu.VMEM((tile, 1), jnp.float32)] * 3,  # m, l, pos
    )

    per_row = pl.pallas_call(
        kernel,
        out_shape=jax.ShapeDtypeStruct((b_pad, 1), jnp.float32),
        grid_spec=grid_spec,
        compiler_params=pltpu.CompilerParams(
            dimension_semantics=("parallel", "arbitrary")),
        cost_estimate=cost,
    )(view0, view0, view1)

    return jnp.sum(per_row[:b, 0]) / b


def _simclr_loss_ref(features, temperature):
    # Pure-JAX reference mirroring the PyTorch forward, for a sanity check.
    b, n, dim = features.shape
    anchor = features[:, 0, :].astype(jnp.float32)
    contrast = jnp.concatenate(
        [features[:, 0, :], features[:, 1, :]], axis=0).astype(jnp.float32)
    dot = anchor @ contrast.T / temperature
    logits = dot - jnp.max(dot, axis=1, keepdims=True)
    eye = jnp.eye(b, dtype=jnp.float32)
    mask = jnp.tile(eye, (1, 2))
    logits_mask = 1.0 - jnp.pad(eye, ((0, 0), (0, b)))
    mask = mask * logits_mask
    exp_logits = jnp.exp(logits) * logits_mask
    log_prob = logits - jnp.log(exp_logits.sum(1, keepdims=True))
    return -jnp.mean((mask * log_prob).sum(1) / mask.sum(1))


if __name__ == "__main__":
    key = jax.random.PRNGKey(0)
    b, dim = 12, 32
    temperature = 0.5
    features = jax.random.normal(key, (b, 2, dim), dtype=jnp.float32)
    # L2-normalize (typical SimCLR embeddings) so the check is robust to
    # MXU precision differences between the kernel and the XLA reference.
    features = features / jnp.linalg.norm(features, axis=-1, keepdims=True)

    ref = _simclr_loss_ref(features, temperature)

    # Default tiling: single 16-row tile -> exercises padded rows & columns.
    loss = simclr_loss(features, temperature)
    jax.block_until_ready(loss)
    assert jnp.allclose(loss, ref, atol=2e-2, rtol=2e-2), (loss, ref)

    # Forced 8-row tiles -> 2x2 grid: exercises online softmax across column
    # chunks and the parallel row-tile axis.
    loss_tiled = simclr_loss(features, temperature, block_rows=8)
    jax.block_until_ready(loss_tiled)
    assert jnp.allclose(loss_tiled, ref, atol=2e-2, rtol=2e-2), (loss_tiled, ref)

    print("KERNEL_OK")
</pallas_src>

<mosaic_0001>
module attributes {stable_mosaic.version = 11 : i64} {
  func.func @_simclr_kernel(%arg0: i32, %arg1: i32, %arg2: memref<16x32xf32, #tpu.memory_space<vmem>>, %arg3: memref<16x32xf32, #tpu.memory_space<vmem>>, %arg4: memref<16x32xf32, #tpu.memory_space<vmem>>, %arg5: memref<16x1xf32, #tpu.memory_space<vmem>>, %arg6: memref<16x1xf32, #tpu.memory_space<vmem>>, %arg7: memref<16x1xf32, #tpu.memory_space<vmem>>, %arg8: memref<16x1xf32, #tpu.memory_space<vmem>>) attributes {dimension_semantics = [#tpu.dimension_semantics<parallel>, #tpu.dimension_semantics<arbitrary>], iteration_bounds = array<i64: 1, 1>, scalar_prefetch = 0 : i64, scratch_operands = 3 : i64, tpu.core_type = #tpu.core_type<tc>, window_params = [{transform_indices = @transform_0, window_bounds = array<i64: 16, 32>}, {transform_indices = @transform_1, window_bounds = array<i64: 16, 32>}, {transform_indices = @transform_2, window_bounds = array<i64: 16, 32>}, {transform_indices = @transform_3, window_bounds = array<i64: 16, 1>}]} {
    %c0_i32 = arith.constant 0 : i32
    %0 = arith.cmpi eq, %arg1, %c0_i32 : i32
    %1 = arith.extui %0 : i1 to i32
    %c0_i32_0 = arith.constant 0 : i32
    %2 = arith.cmpi ne, %1, %c0_i32_0 : i32
    scf.if %2 {
      %cst_33 = arith.constant -1.000000e+30 : f32
      %64 = vector.broadcast %cst_33 : f32 to vector<16x1xf32>
      %c0_34 = arith.constant 0 : index
      %c0_35 = arith.constant 0 : index
      %65 = vector.load %arg6[%c0_34, %c0_35] : memref<16x1xf32, #tpu.memory_space<vmem>>, vector<16x1xf32>
      tpu.vector_store %arg6[%c0_34, %c0_35], %64 {strides = array<i32>} : memref<16x1xf32, #tpu.memory_space<vmem>>, vector<16x1xf32>,
      %cst_36 = arith.constant 0.000000e+00 : f32
      %66 = vector.broadcast %cst_36 : f32 to vector<16x1xf32>
      %c0_37 = arith.constant 0 : index
      %c0_38 = arith.constant 0 : index
      %67 = vector.load %arg7[%c0_37, %c0_38] : memref<16x1xf32, #tpu.memory_space<vmem>>, vector<16x1xf32>
      tpu.vector_store %arg7[%c0_37, %c0_38], %66 {strides = array<i32>} : memref<16x1xf32, #tpu.memory_space<vmem>>, vector<16x1xf32>,
      %cst_39 = arith.constant 0.000000e+00 : f32
      %68 = vector.broadcast %cst_39 : f32 to vector<16x1xf32>
      %c0_40 = arith.constant 0 : index
      %c0_41 = arith.constant 0 : index
      %69 = vector.load %arg8[%c0_40, %c0_41] : memref<16x1xf32, #tpu.memory_space<vmem>>, vector<16x1xf32>
      tpu.vector_store %arg8[%c0_40, %c0_41], %68 {strides = array<i32>} : memref<16x1xf32, #tpu.memory_space<vmem>>, vector<16x1xf32>,
    } else {
    }
    %c0 = arith.constant 0 : index
    %c0_1 = arith.constant 0 : index
    %3 = vector.load %arg2[%c0, %c0_1] : memref<16x32xf32, #tpu.memory_space<vmem>>, vector<16x32xf32>
    %c0_2 = arith.constant 0 : index
    %c0_3 = arith.constant 0 : index
    %4 = vector.load %arg3[%c0_2, %c0_3] : memref<16x32xf32, #tpu.memory_space<vmem>>, vector<16x32xf32>
    %c0_4 = arith.constant 0 : index
    %c0_5 = arith.constant 0 : index
    %5 = vector.load %arg4[%c0_4, %c0_5] : memref<16x32xf32, #tpu.memory_space<vmem>>, vector<16x32xf32>
    %cst = arith.constant dense<0.000000e+00> : vector<16x16xf32>
    %6 = tpu.matmul %3, %4, %cst {dimension_numbers = #tpu.dot_dimension_numbers<[1], [1], [0], [0], [0, 0, 1, 0], [], []>} : vector<16x32xf32>, vector<16x32xf32>, vector<16x16xf32> -> vector<16x16xf32>
    %cst_6 = arith.constant 2.000000e+00 : f32
    %7 = vector.broadcast %cst_6 : f32 to vector<16x16xf32>
    %8 = arith.mulf %6, %7 : vector<16x16xf32>
    %cst_7 = arith.constant dense<0.000000e+00> : vector<16x16xf32>
    %9 = tpu.matmul %3, %5, %cst_7 {dimension_numbers = #tpu.dot_dimension_numbers<[1], [1], [0], [0], [0, 0, 1, 0], [], []>} : vector<16x32xf32>, vector<16x32xf32>, vector<16x16xf32> -> vector<16x16xf32>
    %cst_8 = arith.constant 2.000000e+00 : f32
    %10 = vector.broadcast %cst_8 : f32 to vector<16x16xf32>
    %11 = arith.mulf %9, %10 : vector<16x16xf32>
    %c16_i32 = arith.constant 16 : i32
    %12 = arith.muli %arg0, %c16_i32 : i32
    %13 = tpu.iota {dimensions = array<i32: 0>} : vector<16x16xi32>
    %14 = vector.broadcast %12 : i32 to vector<16x16xi32>
    %15 = arith.addi %14, %13 : vector<16x16xi32>
    %c16_i32_9 = arith.constant 16 : i32
    %16 = arith.muli %arg1, %c16_i32_9 : i32
    %17 = tpu.iota {dimensions = array<i32: 1>} : vector<16x16xi32>
    %18 = vector.broadcast %16 : i32 to vector<16x16xi32>
    %19 = arith.addi %18, %17 : vector<16x16xi32>
    %20 = arith.cmpi eq, %15, %19 : vector<16x16xi32>
    %c0_10 = arith.constant 0 : index
    %c0_11 = arith.constant 0 : index
    %21 = vector.load %arg8[%c0_10, %c0_11] : memref<16x1xf32, #tpu.memory_space<vmem>>, vector<16x1xf32>
    %cst_12 = arith.constant 0.000000e+00 : f32
    %22 = vector.broadcast %cst_12 : f32 to vector<16x16xf32>
    %23 = arith.select %20, %11, %22 : vector<16x16xi1>, vector<16x16xf32>
    %cst_13 = arith.constant dense<0.000000e+00> : vector<16xf32>
    %24 = vector.multi_reduction <add>, %23, %cst_13 [1] : vector<16x16xf32> to vector<16xf32>
    %25 = vector.shape_cast %24 : vector<16xf32> to vector<16x1xf32>
    %26 = arith.addf %21, %25 : vector<16x1xf32>
    %c0_14 = arith.constant 0 : index
    %c0_15 = arith.constant 0 : index
    %27 = vector.load %arg8[%c0_14, %c0_15] : memref<16x1xf32, #tpu.memory_space<vmem>>, vector<16x1xf32>
    tpu.vector_store %arg8[%c0_14, %c0_15], %26 {strides = array<i32>} : memref<16x1xf32, #tpu.memory_space<vmem>>, vector<16x1xf32>,
    %cst_16 = arith.constant dense<true> : vector<16x16xi1>
    %28 = arith.xori %20, %cst_16 : vector<16x16xi1>
    %c12_i32 = arith.constant 12 : i32
    %29 = vector.broadcast %c12_i32 : i32 to vector<16x16xi32>
    %30 = arith.cmpi slt, %19, %29 : vector<16x16xi32>
    %31 = arith.andi %28, %30 : vector<16x16xi1>
    %cst_17 = arith.constant -1.000000e+30 : f32
    %32 = vector.broadcast %cst_17 : f32 to vector<16x16xf32>
    %33 = arith.select %30, %11, %32 : vector<16x16xi1>, vector<16x16xf32>
    %cst_18 = arith.constant -1.000000e+30 : f32
    %34 = vector.broadcast %cst_18 : f32 to vector<16x16xf32>
    %35 = arith.select %31, %8, %34 : vector<16x16xi1>, vector<16x16xf32>
    %c0_19 = arith.constant 0 : index
    %c0_20 = arith.constant 0 : index
    %36 = vector.load %arg6[%c0_19, %c0_20] : memref<16x1xf32, #tpu.memory_space<vmem>>, vector<16x1xf32>
    %cst_21 = arith.constant dense<0xFF800000> : vector<16xf32>
    %37 = vector.multi_reduction <maximumf>, %35, %cst_21 [1] : vector<16x16xf32> to vector<16xf32>
    %38 = vector.shape_cast %37 : vector<16xf32> to vector<16x1xf32>
    %cst_22 = arith.constant dense<0xFF800000> : vector<16xf32>
    %39 = vector.multi_reduction <maximumf>, %33, %cst_22 [1] : vector<16x16xf32> to vector<16xf32>
    %40 = vector.shape_cast %39 : vector<16xf32> to vector<16x1xf32>
    %41 = arith.maximumf %38, %40 : vector<16x1xf32>
    %42 = arith.maximumf %36, %41 : vector<16x1xf32>
    %43 = arith.subf %36, %42 : vector<16x1xf32>
    %44 = math.exp %43 : vector<16x1xf32>
    %45 = vector.broadcast %42 : vector<16x1xf32> to vector<16x16xf32>
    %46 = arith.subf %35, %45 : vector<16x16xf32>
    %47 = math.exp %46 : vector<16x16xf32>
    %cst_23 = arith.constant dense<0.000000e+00> : vector<16xf32>
    %48 = vector.multi_reduction <add>, %47, %cst_23 [1] : vector<16x16xf32> to vector<16xf32>
    %49 = vector.shape_cast %48 : vector<16xf32> to vector<16x1xf32>
    %50 = vector.broadcast %42 : vector<16x1xf32> to vector<16x16xf32>
    %51 = arith.subf %33, %50 : vector<16x16xf32>
    %52 = math.exp %51 : vector<16x16xf32>
    %cst_24 = arith.constant dense<0.000000e+00> : vector<16xf32>
    %53 = vector.multi_reduction <add>, %52, %cst_24 [1] : vector<16x16xf32> to vector<16xf32>
    %54 = vector.shape_cast %53 : vector<16xf32> to vector<16x1xf32>
    %55 = arith.addf %49, %54 : vector<16x1xf32>
    %c0_25 = arith.constant 0 : index
    %c0_26 = arith.constant 0 : index
    %56 = vector.load %arg7[%c0_25, %c0_26] : memref<16x1xf32, #tpu.memory_space<vmem>>, vector<16x1xf32>
    %57 = arith.mulf %44, %56 : vector<16x1xf32>
    %58 = arith.addf %57, %55 : vector<16x1xf32>
    %c0_27 = arith.constant 0 : index
    %c0_28 = arith.constant 0 : index
    %59 = vector.load %arg7[%c0_27, %c0_28] : memref<16x1xf32, #tpu.memory_space<vmem>>, vector<16x1xf32>
    tpu.vector_store %arg7[%c0_27, %c0_28], %58 {strides = array<i32>} : memref<16x1xf32, #tpu.memory_space<vmem>>, vector<16x1xf32>,
    %c0_29 = arith.constant 0 : index
    %c0_30 = arith.constant 0 : index
    %60 = vector.load %arg6[%c0_29, %c0_30] : memref<16x1xf32, #tpu.memory_space<vmem>>, vector<16x1xf32>
    tpu.vector_store %arg6[%c0_29, %c0_30], %42 {strides = array<i32>} : memref<16x1xf32, #tpu.memory_space<vmem>>, vector<16x1xf32>,
    %c0_i32_31 = arith.constant 0 : i32
    %61 = arith.cmpi eq, %arg1, %c0_i32_31 : i32
    %62 = arith.extui %61 : i1 to i32
    %c0_i32_32 = arith.constant 0 : i32
    %63 = arith.cmpi ne, %62, %c0_i32_32 : i32
    scf.if %63 {
      %c0_33 = arith.constant 0 : index
      %c0_34 = arith.constant 0 : index
      %64 = vector.load %arg6[%c0_33, %c0_34] : memref<16x1xf32, #tpu.memory_space<vmem>>, vector<16x1xf32>
      %c0_35 = arith.constant 0 : index
      %c0_36 = arith.constant 0 : index
      %65 = vector.load %arg7[%c0_35, %c0_36] : memref<16x1xf32, #tpu.memory_space<vmem>>, vector<16x1xf32>
      %66 = math.log %65 : vector<16x1xf32>
      %67 = arith.addf %64, %66 : vector<16x1xf32>
      %c0_37 = arith.constant 0 : index
      %c0_38 = arith.constant 0 : index
      %68 = vector.load %arg8[%c0_37, %c0_38] : memref<16x1xf32, #tpu.memory_space<vmem>>, vector<16x1xf32>
      %69 = arith.subf %67, %68 : vector<16x1xf32>
      %c0_39 = arith.constant 0 : index
      %c0_40 = arith.constant 0 : index
      %70 = vector.load %arg5[%c0_39, %c0_40] : memref<16x1xf32, #tpu.memory_space<vmem>>, vector<16x1xf32>
      tpu.vector_store %arg5[%c0_39, %c0_40], %69 {strides = array<i32>} : memref<16x1xf32, #tpu.memory_space<vmem>>, vector<16x1xf32>,
    } else {
    }
    return
  }
  func.func @transform_0(%arg0: i32, %arg1: i32) -> (i32, i32) {
    %c0_i32 = arith.constant 0 : i32
    %c0_i32_0 = arith.constant 0 : i32
    return %arg0, %c0_i32 : i32, i32
  }
  func.func @transform_1(%arg0: i32, %arg1: i32) -> (i32, i32) {
    %c0_i32 = arith.constant 0 : i32
    %c0_i32_0 = arith.constant 0 : i32
    return %arg1, %c0_i32 : i32, i32
  }
  func.func @transform_2(%arg0: i32, %arg1: i32) -> (i32, i32) {
    %c0_i32 = arith.constant 0 : i32
    %c0_i32_0 = arith.constant 0 : i32
    return %arg1, %c0_i32 : i32, i32
  }
  func.func @transform_3(%arg0: i32, %arg1: i32) -> (i32, i32) {
    %c0_i32 = arith.constant 0 : i32
    %c0_i32_0 = arith.constant 0 : i32
    return %arg0, %c0_i32 : i32, i32
  }
}

</mosaic_0001>

<llo_original>
// kernel: tpu_custom_call.1
$region0: #{tpu_custom_call.1}
  #allocation0 [shape = 'u32[]', space=smem, size = 0x4, offset = 0x4, fixed_abs, tag = 'smem constant byte address 0x4 - core index']
  #allocation1 [shape = 'u32[144,128]{1,0:T(1,128)}', space=vmem, size = 0x12000, scoped, tag = 'internal scratch']
  #allocation2 [shape = 'f32[16,1]{1,0:T(8,128)}', space=vmem, size = 0x2000, scoped, tag = 'scratch operand']
  #allocation3 [shape = 'f32[16,1]{1,0:T(8,128)}', space=vmem, size = 0x2000, scoped, tag = 'scratch operand']
  #allocation4 [shape = 'f32[16,1]{1,0:T(8,128)}', space=vmem, size = 0x2000, scoped, tag = 'scratch operand']
  %s0 = inlined_call_operand.hbm [shape: f32[16,32], index: 0, kind: input, shape index: {}]
  %s1 = inlined_call_operand.hbm [shape: f32[16,32], index: 1, kind: input, shape index: {}]
  %s2 = inlined_call_operand.hbm [shape: f32[16,32], index: 2, kind: input, shape index: {}]
  %s3 = inlined_call_operand.vmem [shape: f32[16,1], index: 3, kind: output, shape index: {}]
  %s4 = sld [smem:[#allocation0]]
  $region42: #{tpu_custom_call.1} parent=0
    _
  %s6 = ssub.s32 1, %s4
  %s7 = scalar_select 0, %s6, %s4
  $region1: #{tpu_custom_call.1} parent=0
    #allocation5 [shape = 'u8[8192]{0}', space=vmem, size = 0x2000, scoped, tag = 'input window, operand 0, single buffered']
    #allocation6 [shape = 's32[1]{0}', space=sflag, size = 0x4, scoped, tag = 'scoped memory for tpu_custom_call.1']
    #allocation7 [shape = 'u8[8192]{0}', space=vmem, size = 0x2000, scoped, tag = 'input window, operand 1, single buffered']
    #allocation8 [shape = 's32[1]{0}', space=sflag, size = 0x4, scoped, tag = 'scoped memory for tpu_custom_call.1']
    #allocation9 [shape = 'u8[8192]{0}', space=vmem, size = 0x2000, scoped, tag = 'input window, operand 2, single buffered']
    %8 = vsyncpa [#allocation6], 0
    %9 = vsyncpa [#allocation8], 0
    // Predicated region
    $region2: #{tpu_custom_call.1} parent=1 // pred_check
      _
    $region3: #{tpu_custom_call.1} parent=1 // pred_check_branch
      %11 = sbr.rel (0) target = $region5
    $region4: #{tpu_custom_call.1} parent=1 // pred_region
      %s13 = ssub.s32 256, 256
      %14 = vsyncadd [#allocation6], %s13
      %s15 = sshll.u32 [#allocation5], 4
      %s16 = int_to_ptr.vmem [resolvable:$true] %s15
      %21 = dma.hbm_to_vmem [thread:$0]  %s0, 256, %s16, [#allocation6], 128, 128, 8
    $region5: #{tpu_custom_call.1} parent=1 // pred_fallthru
      _
    // Predicated region
    $region6: #{tpu_custom_call.1} parent=1 // pred_check
      _
    $region7: #{tpu_custom_call.1} parent=1 // pred_check_branch
      %23 = sbr.rel (0) target = $region9
    $region8: #{tpu_custom_call.1} parent=1 // pred_region
      %s25 = ssub.s32 256, 256
      %26 = vsyncadd [#allocation8], %s25
      %s27 = sshll.u32 [#allocation7], 4
      %s28 = int_to_ptr.vmem [resolvable:$true] %s27
      %33 = dma.hbm_to_vmem [thread:$0]  %s1, 256, %s28, [#allocation8], 128, 128, 8
    $region9: #{tpu_custom_call.1} parent=1 // pred_fallthru
      _
    // Predicated region
    $region10: #{tpu_custom_call.1} parent=1 // pred_check
      _
    $region11: #{tpu_custom_call.1} parent=1 // pred_check_branch
      %35 = sbr.rel (0) target = $region13
    $region12: #{tpu_custom_call.1} parent=1 // pred_region
      %s37 = ssub.s32 256, 256
      %38 = vsyncadd [#allocation8], %s37
      %s39 = sshll.u32 [#allocation9], 4
      %s40 = int_to_ptr.vmem [resolvable:$true] %s39
      %45 = dma.hbm_to_vmem [thread:$0]  %s2, 256, %s40, [#allocation8], 128, 128, 8
    $region13: #{tpu_custom_call.1} parent=1 // pred_fallthru
      _
    // Predicated region
    $region14: #{tpu_custom_call.1} parent=1 // pred_check
      _
    $region15: #{tpu_custom_call.1} parent=1 // pred_check_branch
      %47 = sbr.rel (0) target = $region17
    $region16: #{tpu_custom_call.1} parent=1 // pred_region
      %48 = dma.done [#allocation6], 256
    $region17: #{tpu_custom_call.1} parent=1 // pred_fallthru
      _
    // Predicated region
    $region18: #{tpu_custom_call.1} parent=1 // pred_check
      _
    $region19: #{tpu_custom_call.1} parent=1 // pred_check_branch
      %50 = sbr.rel (0) target = $region21
    $region20: #{tpu_custom_call.1} parent=1 // pred_region
      %51 = dma.done [#allocation8], 256
    $region21: #{tpu_custom_call.1} parent=1 // pred_fallthru
      _
    // Predicated region
    $region22: #{tpu_custom_call.1} parent=1 // pred_check
      _
    $region23: #{tpu_custom_call.1} parent=1 // pred_check_branch
      %53 = sbr.rel (0) target = $region25
    $region24: #{tpu_custom_call.1} parent=1 // pred_region
      %54 = dma.done [#allocation8], 256
    $region25: #{tpu_custom_call.1} parent=1 // pred_fallthru
      _
    %p55 = scmp.eq.s32.totalorder 0, 0
    // Predicated region
    $region26: #{tpu_custom_call.1} parent=1 // pred_check
      %p56 = pneg %p55
    $region27: #{tpu_custom_call.1} parent=1 // pred_check_branch
      %58 = sbr.rel (%p56) target = $region29
    $region28: #{tpu_custom_call.1} parent=1 // pred_region
      %vm59 = vcmask 7168
      %60 = vst.msk [vmem:[#allocation2] sm:$0xff] %vm59, -1e+30
      %61 = vst.msk [vmem:[#allocation2 + $0x8] sm:$0xff] %vm59, -1e+30
      %62 = vst.msk [vmem:[#allocation3] sm:$0xff] %vm59, 0.0
      %63 = vst.msk [vmem:[#allocation3 + $0x8] sm:$0xff] %vm59, 0.0
      %64 = vst.msk [vmem:[#allocation4] sm:$0xff] %vm59, 0.0
      %65 = vst.msk [vmem:[#allocation4 + $0x8] sm:$0xff] %vm59, 0.0
    $region29: #{tpu_custom_call.1} parent=1 // pred_fallthru
      _
    %v66 = vld [vmem:[#allocation5] sm:$0xff]
    %v67 = vld [vmem:[#allocation5 + $0x8] sm:$0xff]
    %v68 = vld [vmem:[#allocation7] sm:$0xff]
    %v69 = vld [vmem:[#allocation7 + $0x8] sm:$0xff]
    %v70 = vld [vmem:[#allocation9] sm:$0xff]
    %v71 = vld [vmem:[#allocation9 + $0x8] sm:$0xff]
    %vm72 = vcmask 261120
    %v74 = vsel %vm72, %v66, 0
    %v77 = vsel %vm72, %v67, 0
    %v80 = vsel %vm72, %v68, 0
    %v83 = vsel %vm72, %v69, 0
    %85 = vmatprep.subr.mxu0 0.0
    %86 = vmatpush1.xpose.msra.mxu0 0.0
    %87 = vmatprep.subr.mxu0 0.0
    %88 = vmatpush1.xpose.msra.mxu0 0.0
    %89 = vmatprep.subr.mxu0 0.0
    %90 = vmatpush1.xpose.msra.mxu0 0.0
    %91 = vmatprep.subr.mxu0 0.0
    %92 = vmatpush1.xpose.msra.mxu0 0.0
    %93 = vmatprep.subr.mxu0 0.0
    %94 = vmatpush1.xpose.msra.mxu0 0.0
    %95 = vmatprep.subr.mxu0 0.0
    %96 = vmatpush1.xpose.msra.mxu0 0.0
    %97 = vmatprep.subr.mxu0 0.0
    %98 = vmatpush1.xpose.msra.mxu0 0.0
    %99 = vmatprep.subr.mxu0 0.0
    %100 = vmatpush1.xpose.msra.mxu0 0.0
    %101 = vmatprep.subr.mxu0 0.0
    %102 = vmatpush1.xpose.msra.mxu0 0.0
    %103 = vmatprep.subr.mxu0 0.0
    %104 = vmatpush1.xpose.msra.mxu0 0.0
    %105 = vmatprep.subr.mxu0 0.0
    %106 = vmatpush1.xpose.msra.mxu0 0.0
    %107 = vmatprep.subr.mxu0 0.0
    %108 = vmatpush1.xpose.msra.mxu0 0.0
    %109 = vmatprep.subr.mxu0 0.0
    %110 = vmatpush1.xpose.msra.mxu0 0.0
    %111 = vmatprep.subr.mxu0 0.0
    %112 = vmatpush1.xpose.msra.mxu0 0.0
    %113 = vmatprep.subr.mxu0 0.0
    %114 = vmatpush1.xpose.msra.mxu0 %v83
    %115 = vmatprep.subr.mxu0 0.0
    %116 = vmatpush1.xpose.msra.mxu0 %v80
    %117 = vmatprep.subr.mxu0 0.0
    %118 = vmatpush2.xpose.msra.mxu0 0.0
    %119 = vmatprep.subr.mxu0 0.0
    %120 = vmatpush2.xpose.msra.mxu0 0.0
    %121 = vmatprep.subr.mxu0 0.0
    %122 = vmatpush2.xpose.msra.mxu0 0.0
    %123 = vmatprep.subr.mxu0 0.0
    %124 = vmatpush2.xpose.msra.mxu0 0.0
    %125 = vmatprep.subr.mxu0 0.0
    %126 = vmatpush2.xpose.msra.mxu0 0.0
    %127 = vmatprep.subr.mxu0 0.0
    %128 = vmatpush2.xpose.msra.mxu0 0.0
    %129 = vmatprep.subr.mxu0 0.0
    %130 = vmatpush2.xpose.msra.mxu0 0.0
    %131 = vmatprep.subr.mxu0 0.0
    %132 = vmatpush2.xpose.msra.mxu0 0.0
    %133 = vmatprep.subr.mxu0 0.0
    %134 = vmatpush2.xpose.msra.mxu0 0.0
    %135 = vmatprep.subr.mxu0 0.0
    %136 = vmatpush2.xpose.msra.mxu0 0.0
    %137 = vmatprep.subr.mxu0 0.0
    %138 = vmatpush2.xpose.msra.mxu0 0.0
    %139 = vmatprep.subr.mxu0 0.0
    %140 = vmatpush2.xpose.msra.mxu0 0.0
    %141 = vmatprep.subr.mxu0 0.0
    %142 = vmatpush2.xpose.msra.mxu0 0.0
    %143 = vmatprep.subr.mxu0 0.0
    %144 = vmatpush2.xpose.msra.mxu0 0.0
    %145 = vmatprep.subr.mxu0 0.0
    %146 = vmatpush2.xpose.msra.mxu0 0.0
    %147 = vmatprep.subr.mxu0 0.0
    %148 = vmatpush2.xpose.msra.mxu0 0.0
    %149 = vmatprep.mubr.f32.mxu0 0.0
    %150 = vmatmul.mubr.f32.gmra.mxu0 %v74
    %v151 = vpop.f32.mrf.mxu0
    %v152 = vadd.f32 0.0, %v151
    %v153 = vpop.f32.mrf.mxu0
    %154 = vmatprep.mubr.f32.mxu0 0.0
    %155 = vmatmul.mubr.f32.gmra.mxu0 %v77
    %v156 = vpop.f32.mrf.mxu0
    %v157 = vadd.f32 0.0, %v156
    %v158 = vpop.f32.mrf.mxu0
    %159 = vdwg.mxu0
    %v160 = vmul.f32 %v152, 2.0
    %v161 = vmul.f32 %v157, 2.0
    %v163 = vsel %vm72, %v70, 0
    %v166 = vsel %vm72, %v71, 0
    %168 = vmatprep.subr.mxu0 0.0
    %169 = vmatpush1.xpose.msra.mxu0 0.0
    %170 = vmatprep.subr.mxu0 0.0
    %171 = vmatpush1.xpose.msra.mxu0 0.0
    %172 = vmatprep.subr.mxu0 0.0
    %173 = vmatpush1.xpose.msra.mxu0 0.0
    %174 = vmatprep.subr.mxu0 0.0
    %175 = vmatpush1.xpose.msra.mxu0 0.0
    %176 = vmatprep.subr.mxu0 0.0
    %177 = vmatpush1.xpose.msra.mxu0 0.0
    %178 = vmatprep.subr.mxu0 0.0
    %179 = vmatpush1.xpose.msra.mxu0 0.0
    %180 = vmatprep.subr.mxu0 0.0
    %181 = vmatpush1.xpose.msra.mxu0 0.0
    %182 = vmatprep.subr.mxu0 0.0
    %183 = vmatpush1.xpose.msra.mxu0 0.0
    %184 = vmatprep.subr.mxu0 0.0
    %185 = vmatpush1.xpose.msra.mxu0 0.0
    %186 = vmatprep.subr.mxu0 0.0
    %187 = vmatpush1.xpose.msra.mxu0 0.0
    %188 = vmatprep.subr.mxu0 0.0
    %189 = vmatpush1.xpose.msra.mxu0 0.0
    %190 = vmatprep.subr.mxu0 0.0
    %191 = vmatpush1.xpose.msra.mxu0 0.0
    %192 = vmatprep.subr.mxu0 0.0
    %193 = vmatpush1.xpose.msra.mxu0 0.0
    %194 = vmatprep.subr.mxu0 0.0
    %195 = vmatpush1.xpose.msra.mxu0 0.0
    %196 = vmatprep.subr.mxu0 0.0
    %197 = vmatpush1.xpose.msra.mxu0 %v166
    %198 = vmatprep.subr.mxu0 0.0
    %199 = vmatpush1.xpose.msra.mxu0 %v163
    %200 = vmatprep.subr.mxu0 0.0
    %201 = vmatpush2.xpose.msra.mxu0 0.0
    %202 = vmatprep.subr.mxu0 0.0
    %203 = vmatpush2.xpose.msra.mxu0 0.0
    %204 = vmatprep.subr.mxu0 0.0
    %205 = vmatpush2.xpose.msra.mxu0 0.0
    %206 = vmatprep.subr.mxu0 0.0
    %207 = vmatpush2.xpose.msra.mxu0 0.0
    %208 = vmatprep.subr.mxu0 0.0
    %209 = vmatpush2.xpose.msra.mxu0 0.0
    %210 = vmatprep.subr.mxu0 0.0
    %211 = vmatpush2.xpose.msra.mxu0 0.0
    %212 = vmatprep.subr.mxu0 0.0
    %213 = vmatpush2.xpose.msra.mxu0 0.0
    %214 = vmatprep.subr.mxu0 0.0
    %215 = vmatpush2.xpose.msra.mxu0 0.0
    %216 = vmatprep.subr.mxu0 0.0
    %217 = vmatpush2.xpose.msra.mxu0 0.0
    %218 = vmatprep.subr.mxu0 0.0
    %219 = vmatpush2.xpose.msra.mxu0 0.0
    %220 = vmatprep.subr.mxu0 0.0
    %221 = vmatpush2.xpose.msra.mxu0 0.0
    %222 = vmatprep.subr.mxu0 0.0
    %223 = vmatpush2.xpose.msra.mxu0 0.0
    %224 = vmatprep.subr.mxu0 0.0
    %225 = vmatpush2.xpose.msra.mxu0 0.0
    %226 = vmatprep.subr.mxu0 0.0
    %227 = vmatpush2.xpose.msra.mxu0 0.0
    %228 = vmatprep.subr.mxu0 0.0
    %229 = vmatpush2.xpose.msra.mxu0 0.0
    %230 = vmatprep.subr.mxu0 0.0
    %231 = vmatpush2.xpose.msra.mxu0 0.0
    %232 = vmatprep.mubr.f32.mxu0 0.0
    %233 = vmatmul.mubr.f32.gmra.mxu0 %v74
    %v234 = vpop.f32.mrf.mxu0
    %v235 = vadd.f32 0.0, %v234
    %v236 = vpop.f32.mrf.mxu0
    %237 = vmatprep.mubr.f32.mxu0 0.0
    %238 = vmatmul.mubr.f32.gmra.mxu0 %v77
    %v239 = vpop.f32.mrf.mxu0
    %v240 = vadd.f32 0.0, %v239
    %v241 = vpop.f32.mrf.mxu0
    %242 = vdwg.mxu0
    %v243 = vmul.f32 %v235, 2.0
    %v244 = vmul.f32 %v240, 2.0
    %s245 = smul.u32 0, 16
    %v246 = vlaneseq
    %v247 = vshrl.u32 %v246, 7
    %v248 = vadd.s32 %v247, 8
    %v249 = vstv %s245
    %v250 = vadd.s32 %v249, %v247
    %v251 = vadd.s32 %v249, %v248
    %s252 = smul.u32 0, 16
    %v253 = vlaneseq
    %v254 = vand.u32 %v253, 127
    %v255 = vstv %s252
    %v256 = vadd.s32 %v255, %v254
    %vm257 = vcmp.eq.s32.totalorder %v250, %v256
    %vm258 = vcmp.eq.s32.totalorder %v251, %v256
    %v259 = vld [vmem:[#allocation4] sm:$0xff]
    %v260 = vld [vmem:[#allocation4 + $0x8] sm:$0xff]
    %v261 = vsel %vm257, %v243, 0.0
    %v262 = vsel %vm258, %v244, 0.0
    %vm263 = vcmask 130048
    %v264 = vsel %vm263, %v261, 0.0
    %265 = vadd.xlane.f32.xlu0 %v264
    %v266 = vpop.xlane.xlu0 %265
    %v267 = vsel %vm263, %v262, 0.0
    %268 = vadd.xlane.f32.xlu0 %v267
    %v269 = vpop.xlane.xlu0 %268
    %v270 = vadd.f32 %v259, %v266
    %v271 = vadd.f32 %v260, %v269
    %vm272 = vcmask 7168
    %273 = vst.msk [vmem:[#allocation4] sm:$0xff] %vm272, %v270
    %274 = vst.msk [vmem:[#allocation4 + $0x8] sm:$0xff] %vm272, %v271
    %vm275 = vmxor %vm257, 1
    %vm276 = vmxor %vm258, 1
    %vm277 = vcmp.lt.s32.totalorder %v256, 12
    %vm278 = vmand %vm275, %vm277
    %vm279 = vmand %vm276, %vm277
    %v280 = vsel %vm277, %v243, -1e+30
    %v281 = vsel %vm277, %v244, -1e+30
    %v282 = vsel %vm278, %v160, -1e+30
    %v283 = vsel %vm279, %v161, -1e+30
    %v284 = vld [vmem:[#allocation2] sm:$0xff]
    %v285 = vld [vmem:[#allocation2 + $0x8] sm:$0xff]
    %v286 = vsel %vm263, %v282, -inf
    %287 = vmax.xlane.f32.xlu0 %v286
    %v288 = vpop.xlane.xlu0 %287
    %v289 = vsel %vm263, %v283, -inf
    %290 = vmax.xlane.f32.xlu0 %v289
    %v291 = vpop.xlane.xlu0 %290
    %v292 = vsel %vm263, %v280, -inf
    %293 = vmax.xlane.f32.xlu0 %v292
    %v294 = vpop.xlane.xlu0 %293
    %v295 = vsel %vm263, %v281, -inf
    %296 = vmax.xlane.f32.xlu0 %v295
    %v297 = vpop.xlane.xlu0 %296
    %v298 = vmax.f32 %v288, %v294
    %v299 = vmax.f32 %v291, %v297
    %v300 = vmax.f32 %v284, %v298
    %v301 = vmax.f32 %v285, %v299
    %v302 = vsub.f32 %v284, %v300
    %v303 = vsub.f32 %v285, %v301
    %v304 = vmul.f32 %v302, 1.442695
    %v305 = vpow.pop %v304
    %v306 = vmul.f32 %v303, 1.442695
    %v307 = vpow.pop %v306
    %309 = vset.pattern.permute.xlu0 0
    %310 = vperm.xlu0 %309, %v300
    %v311 = vpop.permute.xlu0 %310
    %314 = vset.pattern.permute.xlu0 0
    %315 = vperm.xlu0 %314, %v301
    %v316 = vpop.permute.xlu0 %315
    %v318 = vsub.f32 %v282, %v311
    %v319 = vsub.f32 %v283, %v316
    %v320 = vmul.f32 %v318, 1.442695
    %v321 = vpow.pop %v320
    %v322 = vmul.f32 %v319, 1.442695
    %v323 = vpow.pop %v322
    %v324 = vsel %vm263, %v321, 0.0
    %325 = vadd.xlane.f32.xlu0 %v324
    %v326 = vpop.xlane.xlu0 %325
    %v327 = vsel %vm263, %v323, 0.0
    %328 = vadd.xlane.f32.xlu0 %v327
    %v329 = vpop.xlane.xlu0 %328
    %v330 = vsub.f32 %v280, %v311
    %v331 = vsub.f32 %v281, %v316
    %v332 = vmul.f32 %v330, 1.442695
    %v333 = vpow.pop %v332
    %v334 = vmul.f32 %v331, 1.442695
    %v335 = vpow.pop %v334
    %v336 = vsel %vm263, %v333, 0.0
    %337 = vadd.xlane.f32.xlu0 %v336
    %v338 = vpop.xlane.xlu0 %337
    %v339 = vsel %vm263, %v335, 0.0
    %340 = vadd.xlane.f32.xlu0 %v339
    %v341 = vpop.xlane.xlu0 %340
    %v342 = vadd.f32 %v326, %v338
    %v343 = vadd.f32 %v329, %v341
    %v344 = vld [vmem:[#allocation3] sm:$0xff]
    %v345 = vld [vmem:[#allocation3 + $0x8] sm:$0xff]
    %v346 = vmul.f32 %v305, %v344
    %v347 = vmul.f32 %v307, %v345
    %v348 = vadd.f32 %v346, %v342
    %v349 = vadd.f32 %v347, %v343
    %350 = vst.msk [vmem:[#allocation3] sm:$0xff] %vm272, %v348
    %351 = vst.msk [vmem:[#allocation3 + $0x8] sm:$0xff] %vm272, %v349
    %352 = vst.msk [vmem:[#allocation2] sm:$0xff] %vm272, %v300
    %353 = vst.msk [vmem:[#allocation2 + $0x8] sm:$0xff] %vm272, %v301
    // Predicated region
    $region30: #{tpu_custom_call.1} parent=1 // pred_check
      %p354 = pneg %p55
    $region31: #{tpu_custom_call.1} parent=1 // pred_check_branch
      %356 = sbr.rel (%p354) target = $region33
    $region32: #{tpu_custom_call.1} parent=1 // pred_region
      %v357 = vld [vmem:[#allocation2] sm:$0xff]
      %v358 = vld [vmem:[#allocation2 + $0x8] sm:$0xff]
      %v359 = vld [vmem:[#allocation3] sm:$0xff]
      %v360 = vld [vmem:[#allocation3 + $0x8] sm:$0xff]
      %v361 = vlog2.pop %v359
      %v362 = vmul.f32 %v361, 0.6931472
      %v363 = vlog2.pop %v360
      %v364 = vmul.f32 %v363, 0.6931472
      %v365 = vadd.f32 %v357, %v362
      %v366 = vadd.f32 %v358, %v364
      %v367 = vld [vmem:[#allocation4] sm:$0xff]
      %v368 = vld [vmem:[#allocation4 + $0x8] sm:$0xff]
      %v369 = vsub.f32 %v365, %v367
      %v370 = vsub.f32 %v366, %v368
      %371 = vst.msk [vmem:[%s3] sm:$0xff] %vm272, %v369
      %372 = vst.msk [vmem:[%s3 + $0x8] sm:$0xff] %vm272, %v370
    $region33: #{tpu_custom_call.1} parent=1 // pred_fallthru
      _
    // Predicated region
    $region34: #{tpu_custom_call.1} parent=1 // pred_check
      _
    $region35: #{tpu_custom_call.1} parent=1 // pred_check_branch
      %374 = sbr.rel (0) target = $region37
    $region36: #{tpu_custom_call.1} parent=1 // pred_region
      _
    $region37: #{tpu_custom_call.1} parent=1 // pred_fallthru
      _
    // Predicated region
    $region38: #{tpu_custom_call.1} parent=1 // pred_check
      _
    $region39: #{tpu_custom_call.1} parent=1 // pred_check_branch
      %376 = sbr.rel (0) target = $region41
    $region40: #{tpu_custom_call.1} parent=1 // pred_region
      _
    $region41: #{tpu_custom_call.1} parent=1 // pred_fallthru
      _
    %377 = vsyncpa [#allocation6], 1
    %378 = vsyncpa [#allocation8], 1

</llo_original>
